<compile_context>
chip_gen: v7x
topology: tpu7x:2x2x1
jax: 0.10.0
libtpu: 0.0.40
codegen_flags: <defaults>
</compile_context>

<pallas_src>
import numpy as np

import jax
import jax.numpy as jnp
from jax.experimental import pallas as pl
from jax.experimental.pallas import tpu as pltpu


def _round_up(x, m):
    return ((x + m - 1) // m) * m


def conv_unit_kernel(x2_ref, w2_ref, o_ref):
    # x2_ref: (Kc_pad, lane_tile)  im2col slab (bias row folded in, zero-padded)
    # w2_ref: (C_out, Kc_pad)      folded weights + bias column (resident across grid)
    # o_ref : (C_out, lane_tile)
    o_ref[...] = jnp.dot(w2_ref[...], x2_ref[...],
                         preferred_element_type=jnp.float32).astype(o_ref.dtype)


def conv_unit_forward(x, weight, bias, stride, *, lane_tile=512):
    """Pallas implementation of ConvUnit.forward (Conv2d kernel=(K,1), stride, bias)."""
    n, c_in, h, w = x.shape
    c_out, c_in_w, k, kw = weight.shape
    assert c_in_w == c_in and kw == 1
    s_h = s_w = int(stride)
    h_out = (h - k) // s_h + 1
    w_out = (w - 1) // s_w + 1
    l = h_out * w_out
    l_tot = n * l                                   # all samples share one lane axis

    lane_tile = min(int(lane_tile), _round_up(l_tot, 128))
    l_pad = _round_up(l_tot, lane_tile)
    kc = k * c_in + 1                               # +1 = folded bias row
    kc_pad = _round_up(kc, 8)                       # sublane-aligned contraction

    # ---- layout glue (pure indexing, fused by XLA) ----
    # patches[n, ci, kh, ho, wo] = x[n, ci, kh + s_h*ho, s_w*wo]   (one gather)
    h_idx = np.arange(k)[:, None, None] + s_h * np.arange(h_out)[None, :, None]
    w_idx = (s_w * np.arange(w_out))[None, None, :]
    patches = x[:, :, h_idx, w_idx]                                  # (N, C_in, K, H_out, W_out)
    x2 = jnp.transpose(patches, (2, 1, 0, 3, 4)).reshape(k * c_in, l_tot)
    x2 = jnp.concatenate([x2, jnp.ones((1, l_tot), x2.dtype)], axis=0)   # bias row
    x2 = jnp.pad(x2, ((0, kc_pad - kc), (0, l_pad - l_tot)))             # (Kc_pad, L_pad)

    # Folded weights: column index = kh*C_in + ci (tap-major, matches X2 rows);
    # last real column is the bias.
    w2 = jnp.transpose(weight[:, :, :, 0], (0, 2, 1)).reshape(c_out, k * c_in)
    w2 = jnp.concatenate([w2, bias.reshape(c_out, 1).astype(w2.dtype)], axis=1)
    w2 = jnp.pad(w2, ((0, 0), (0, kc_pad - kc)))                         # (C_out, Kc_pad)

    grid = (l_pad // lane_tile,)
    # Advisory cost estimate with REAL element counts (no pad lanes).
    flops = 2 * c_out * kc * l_tot
    bytes_accessed = 4 * (kc * l_tot + c_out * kc + c_out * l_tot)

    # TODO(synk): for very large K*C_in, add a contraction grid axis + VMEM accumulator
    # so the (Kc_pad, lane_tile) input block stays within scoped VMEM on v7x.
    out2 = pl.pallas_call(
        conv_unit_kernel,
        out_shape=jax.ShapeDtypeStruct((c_out, l_pad), x.dtype),
        grid_spec=pltpu.PrefetchScalarGridSpec(
            num_scalar_prefetch=0,
            grid=grid,
            in_specs=[
                pl.BlockSpec((kc_pad, lane_tile), lambda i: (0, i)),
                pl.BlockSpec((c_out, kc_pad), lambda i: (0, 0)),   # weights resident
            ],
            out_specs=pl.BlockSpec((c_out, lane_tile), lambda i: (0, i)),
        ),
        compiler_params=pltpu.CompilerParams(dimension_semantics=("parallel",)),
        cost_estimate=pl.CostEstimate(flops=flops, transcendentals=0,
                                      bytes_accessed=bytes_accessed),
    )(x2, w2)

    # TODO(synk): if this layer feeds another ConvUnit, keep the (C_out, N*L_pad)
    # lane-dense layout between layers instead of paying this unpack HBM pass.
    out = out2[:, :l_tot].reshape(c_out, n, h_out, w_out)
    return jnp.transpose(out, (1, 0, 2, 3))


if __name__ == "__main__":
    # ConvUnit(input_dim=4, out_dim=8, kernel_size=3, stride=2)
    N, C_IN, H, W = 2, 4, 16, 16
    C_OUT, K, STRIDE = 8, 3, 2

    key = jax.random.PRNGKey(0)
    kx, kw_, kb = jax.random.split(key, 3)
    x = jax.random.normal(kx, (N, C_IN, H, W), dtype=jnp.float32)
    # Deterministic synthetic parameters (shapes match nn.Conv2d(C_IN, C_OUT, (K,1))).
    weight = 0.1 * jax.random.normal(kw_, (C_OUT, C_IN, K, 1), dtype=jnp.float32)
    bias = 0.1 * jax.random.normal(kb, (C_OUT,), dtype=jnp.float32)

    out = jax.block_until_ready(conv_unit_forward(x, weight, bias, STRIDE))

    # Reference check (same semantics as torch.nn.Conv2d, VALID padding).
    ref = jax.lax.conv_general_dilated(
        x, weight, window_strides=(STRIDE, STRIDE), padding="VALID",
        dimension_numbers=("NCHW", "OIHW", "NCHW"),
    ) + bias.reshape(1, C_OUT, 1, 1)
    assert out.shape == ref.shape, (out.shape, ref.shape)
    assert jnp.allclose(out, ref, atol=1e-5, rtol=1e-5), float(jnp.max(jnp.abs(out - ref)))

    print("KERNEL_OK")
</pallas_src>

<mosaic_0001>
module attributes {stable_mosaic.version = 11 : i64} {
  func.func @conv_unit_kernel(%arg0: i32, %arg1: memref<16x128xf32, #tpu.memory_space<vmem>>, %arg2: memref<8x16xf32, #tpu.memory_space<vmem>>, %arg3: memref<8x128xf32, #tpu.memory_space<vmem>>) attributes {dimension_semantics = [#tpu.dimension_semantics<parallel>], iteration_bounds = array<i64: 1>, scalar_prefetch = 0 : i64, scratch_operands = 0 : i64, tpu.core_type = #tpu.core_type<tc>, window_params = [{transform_indices = @transform_0, window_bounds = array<i64: 16, 128>}, {pipeline_mode = #tpu.pipeline_mode<synchronous>, transform_indices = @transform_1, window_bounds = array<i64: 8, 16>}, {transform_indices = @transform_2, window_bounds = array<i64: 8, 128>}]} {
    %c0 = arith.constant 0 : index
    %c0_0 = arith.constant 0 : index
    %0 = vector.load %arg2[%c0, %c0_0] : memref<8x16xf32, #tpu.memory_space<vmem>>, vector<8x16xf32>
    %c0_1 = arith.constant 0 : index
    %c0_2 = arith.constant 0 : index
    %1 = vector.load %arg1[%c0_1, %c0_2] : memref<16x128xf32, #tpu.memory_space<vmem>>, vector<16x128xf32>
    %cst = arith.constant dense<0.000000e+00> : vector<8x128xf32>
    %2 = tpu.matmul %0, %1, %cst {dimension_numbers = #tpu.dot_dimension_numbers<[1], [0], [0], [1], [0, 0, 1, 1], [], []>} : vector<8x16xf32>, vector<16x128xf32>, vector<8x128xf32> -> vector<8x128xf32>
    %c0_3 = arith.constant 0 : index
    %c0_4 = arith.constant 0 : index
    %3 = vector.load %arg3[%c0_3, %c0_4] : memref<8x128xf32, #tpu.memory_space<vmem>>, vector<8x128xf32>
    tpu.vector_store %arg3[%c0_3, %c0_4], %2 {strides = array<i32>} : memref<8x128xf32, #tpu.memory_space<vmem>>, vector<8x128xf32>,
    return
  }
  func.func @transform_0(%arg0: i32) -> (i32, i32) {
    %c0_i32 = arith.constant 0 : i32
    %c0_i32_0 = arith.constant 0 : i32
    return %c0_i32, %arg0 : i32, i32
  }
  func.func @transform_1(%arg0: i32) -> (i32, i32) {
    %c0_i32 = arith.constant 0 : i32
    %c0_i32_0 = arith.constant 0 : i32
    %c0_i32_1 = arith.constant 0 : i32
    return %c0_i32, %c0_i32_0 : i32, i32
  }
  func.func @transform_2(%arg0: i32) -> (i32, i32) {
    %c0_i32 = arith.constant 0 : i32
    %c0_i32_0 = arith.constant 0 : i32
    return %c0_i32, %arg0 : i32, i32
  }
}

</mosaic_0001>

<llo_original>
// kernel: tpu_custom_call.1
$region0: #{tpu_custom_call.1}
  #allocation0 [shape = 'u32[]', space=smem, size = 0x4, offset = 0x4, fixed_abs, tag = 'smem constant byte address 0x4 - core index']
  #allocation1 [shape = 'u32[144,128]{1,0:T(1,128)}', space=vmem, size = 0x12000, scoped, tag = 'internal scratch']
  %s0 = inlined_call_operand.hbm [shape: f32[16,128], index: 0, kind: input, shape index: {}]
  %s1 = inlined_call_operand.hbm [shape: f32[8,16], index: 1, kind: input, shape index: {}]
  %s2 = inlined_call_operand.hbm [shape: f32[8,128], index: 2, kind: output, shape index: {}]
  %s3 = sld [smem:[#allocation0]]
  $region26: #{tpu_custom_call.1} parent=0
    _
  %s5 = ssub.s32 1, %s3
  %s6 = scalar_select 0, %s5, %s3
  $region1: #{tpu_custom_call.1} parent=0
    #allocation2 [shape = 'u8[8192]{0}', space=vmem, size = 0x2000, scoped, tag = 'input window, operand 0, single buffered']
    #allocation3 [shape = 's32[1]{0}', space=sflag, size = 0x4, scoped, tag = 'scoped memory for tpu_custom_call.1']
    #allocation4 [shape = 's32[1]{0}', space=sflag, size = 0x4, scoped, tag = 'scoped memory for tpu_custom_call.1']
    #allocation5 [shape = 'u8[4096]{0}', space=vmem, size = 0x1000, scoped, tag = 'input window, operand 1, single buffered']
    #allocation6 [shape = 's32[1]{0}', space=sflag, size = 0x4, scoped, tag = 'scoped memory for tpu_custom_call.1']
    #allocation7 [shape = 'u8[4096]{0}', space=vmem, size = 0x1000, scoped, tag = 'output window, operand 0, single buffered']
    %7 = vsyncpa [#allocation3], 0
    %8 = vsyncpa [#allocation6], 0
    %9 = vsyncpa [#allocation4], 0
    // Predicated region
    $region2: #{tpu_custom_call.1} parent=1 // pred_check
      _
    $region3: #{tpu_custom_call.1} parent=1 // pred_check_branch
      %11 = sbr.rel (0) target = $region5
    $region4: #{tpu_custom_call.1} parent=1 // pred_region
      %s13 = ssub.s32 256, 256
      %14 = vsyncadd [#allocation3], %s13
      %s15 = sshll.u32 [#allocation2], 4
      %s16 = int_to_ptr.vmem [resolvable:$true] %s15
      %21 = dma.hbm_to_vmem [thread:$0]  %s0, 256, %s16, [#allocation3], 128, 128, 8
    $region5: #{tpu_custom_call.1} parent=1 // pred_fallthru
      _
    // Predicated region
    $region6: #{tpu_custom_call.1} parent=1 // pred_check
      _
    $region7: #{tpu_custom_call.1} parent=1 // pred_check_branch
      %23 = sbr.rel (0) target = $region9
    $region8: #{tpu_custom_call.1} parent=1 // pred_region
      %s25 = ssub.s32 128, 128
      %26 = vsyncadd [#allocation6], %s25
      %s28 = sshll.u32 [#allocation5], 4
      %s29 = int_to_ptr.vmem [resolvable:$true] %s28
      %31 = dma.hbm_to_vmem [thread:$0]  %s1, 128, %s29, [#allocation6]
    $region9: #{tpu_custom_call.1} parent=1 // pred_fallthru
      _
    // Predicated region
    $region10: #{tpu_custom_call.1} parent=1 // pred_check
      _
    $region11: #{tpu_custom_call.1} parent=1 // pred_check_branch
      %33 = sbr.rel (0) target = $region13
    $region12: #{tpu_custom_call.1} parent=1 // pred_region
      %34 = dma.done [#allocation3], 256
    $region13: #{tpu_custom_call.1} parent=1 // pred_fallthru
      _
    // Predicated region
    $region14: #{tpu_custom_call.1} parent=1 // pred_check
      _
    $region15: #{tpu_custom_call.1} parent=1 // pred_check_branch
      %36 = sbr.rel (0) target = $region17
    $region16: #{tpu_custom_call.1} parent=1 // pred_region
      %37 = dma.done [#allocation6], 128
    $region17: #{tpu_custom_call.1} parent=1 // pred_fallthru
      _
    %v38 = vld [vmem:[#allocation5] sm:$0xff]
    %v39 = vld [vmem:[#allocation2] sm:$0xff]
    %v40 = vld [vmem:[#allocation2 + $0x8] sm:$0xff]
    %vm41 = vcmask 130048
    %v43 = vsel %vm41, %v38, 0
    %45 = vmatprep.subr.mxu0 0.0
    %46 = vmatpush1.msra.mxu0 %v39
    %47 = vmatprep.subr.mxu0 0.0
    %48 = vmatpush1.msra.mxu0 %v40
    %49 = vmatprep.subr.mxu0 0.0
    %50 = vmatpush1.msra.mxu0 0.0
    %51 = vmatprep.subr.mxu0 0.0
    %52 = vmatpush1.msra.mxu0 0.0
    %53 = vmatprep.subr.mxu0 0.0
    %54 = vmatpush1.msra.mxu0 0.0
    %55 = vmatprep.subr.mxu0 0.0
    %56 = vmatpush1.msra.mxu0 0.0
    %57 = vmatprep.subr.mxu0 0.0
    %58 = vmatpush1.msra.mxu0 0.0
    %59 = vmatprep.subr.mxu0 0.0
    %60 = vmatpush1.msra.mxu0 0.0
    %61 = vmatprep.subr.mxu0 0.0
    %62 = vmatpush1.msra.mxu0 0.0
    %63 = vmatprep.subr.mxu0 0.0
    %64 = vmatpush1.msra.mxu0 0.0
    %65 = vmatprep.subr.mxu0 0.0
    %66 = vmatpush1.msra.mxu0 0.0
    %67 = vmatprep.subr.mxu0 0.0
    %68 = vmatpush1.msra.mxu0 0.0
    %69 = vmatprep.subr.mxu0 0.0
    %70 = vmatpush1.msra.mxu0 0.0
    %71 = vmatprep.subr.mxu0 0.0
    %72 = vmatpush1.msra.mxu0 0.0
    %73 = vmatprep.subr.mxu0 0.0
    %74 = vmatpush1.msra.mxu0 0.0
    %75 = vmatprep.subr.mxu0 0.0
    %76 = vmatpush1.msra.mxu0 0.0
    %77 = vmatprep.subr.mxu0 0.0
    %78 = vmatpush1.msra.mxu0 0.0
    %79 = vmatprep.subr.mxu0 0.0
    %80 = vmatpush1.msra.mxu0 0.0
    %81 = vmatprep.subr.mxu0 0.0
    %82 = vmatpush1.msra.mxu0 0.0
    %83 = vmatprep.subr.mxu0 0.0
    %84 = vmatpush1.msra.mxu0 0.0
    %85 = vmatprep.subr.mxu0 0.0
    %86 = vmatpush1.msra.mxu0 0.0
    %87 = vmatprep.subr.mxu0 0.0
    %88 = vmatpush1.msra.mxu0 0.0
    %89 = vmatprep.subr.mxu0 0.0
    %90 = vmatpush1.msra.mxu0 0.0
    %91 = vmatprep.subr.mxu0 0.0
    %92 = vmatpush1.msra.mxu0 0.0
    %93 = vmatprep.subr.mxu0 0.0
    %94 = vmatpush1.msra.mxu0 0.0
    %95 = vmatprep.subr.mxu0 0.0
    %96 = vmatpush1.msra.mxu0 0.0
    %97 = vmatprep.subr.mxu0 0.0
    %98 = vmatpush1.msra.mxu0 0.0
    %99 = vmatprep.subr.mxu0 0.0
    %100 = vmatpush1.msra.mxu0 0.0
    %101 = vmatprep.subr.mxu0 0.0
    %102 = vmatpush1.msra.mxu0 0.0
    %103 = vmatprep.subr.mxu0 0.0
    %104 = vmatpush1.msra.mxu0 0.0
    %105 = vmatprep.subr.mxu0 0.0
    %106 = vmatpush1.msra.mxu0 0.0
    %107 = vmatprep.subr.mxu0 0.0
    %108 = vmatpush1.msra.mxu0 0.0
    %109 = vmatprep.mubr.f32.mxu0 0.0
    %110 = vmatmul.mubr.f32.gmra.mrb[0].mxu0 %v43
    %v111 = vpop.f32.mrb[0].mxu0
    %v112 = vadd.f32 0.0, %v111
    %v113 = vpop.f32.mrb[0].mxu0
    %114 = vdwg.mxu0
    %115 = vst [vmem:[#allocation7] sm:$0xff] %v112
    // Predicated region
    $region18: #{tpu_custom_call.1} parent=1 // pred_check
      _
    $region19: #{tpu_custom_call.1} parent=1 // pred_check_branch
      %117 = sbr.rel (0) target = $region21
    $region20: #{tpu_custom_call.1} parent=1 // pred_region
      %s119 = ssub.s32 128, 128
      %120 = vsyncadd [#allocation4], %s119
      %s122 = sshll.u32 [#allocation7], 4
      %s123 = int_to_ptr.vmem [resolvable:$true] %s122
      %125 = dma.vmem_to_hbm [thread:$0]  %s123, 128, %s2, [#allocation4]
    $region21: #{tpu_custom_call.1} parent=1 // pred_fallthru
      _
    // Predicated region
    $region22: #{tpu_custom_call.1} parent=1 // pred_check
      _
    $region23: #{tpu_custom_call.1} parent=1 // pred_check_branch
      %127 = sbr.rel (0) target = $region25
    $region24: #{tpu_custom_call.1} parent=1 // pred_region
      %128 = dma.done [#allocation4], 128
    $region25: #{tpu_custom_call.1} parent=1 // pred_fallthru
      _
    %129 = vsyncpa [#allocation3], 1
    %130 = vsyncpa [#allocation6], 1
    %131 = vsyncpa [#allocation4], 1

</llo_original>
